<compile_context>
chip_gen: v6e
topology: v6e:2x2x1
jax: 0.10.0
libtpu: 0.0.40
codegen_flags: <defaults>
</compile_context>

<pallas_src>
import functools

import jax
import jax.numpy as jnp
from jax.experimental import pallas as pl
from jax.experimental.pallas import tpu as pltpu

EPS = 1e-5


def _identity_unet_block_kernel(stats_ref, x_ref, gamma_ref, beta_ref,
                                w_ref, b_ref, o_ref, *, vpu_conv):
    # stats_ref: (N, 2) f32 in SMEM  -- per-sample [mean, inv_std] (scalar prefetch)
    # x_ref:     (C, tHW)            -- one HW tile of one sample
    # gamma_ref: (C, tHW)            -- matching LayerNorm affine slice
    # beta_ref:  (C, tHW)
    # w_ref:     (out_c, C)          -- 1x1 conv weight
    # b_ref:     (out_c, 1)          -- conv bias
    # o_ref:     (out_c, tHW)        -- lane-dense full-tile store
    n = pl.program_id(0)
    mean = stats_ref[n, 0]
    inv = stats_ref[n, 1]

    # LayerNorm apply in f32 (stats were computed over the whole (C,H,W) sample).
    x = x_ref[...].astype(jnp.float32)
    xn = (x - mean) * inv
    xn = xn * gamma_ref[...].astype(jnp.float32) + beta_ref[...].astype(jnp.float32)

    bias = b_ref[...].astype(jnp.float32)                 # (out_c, 1)

    if vpu_conv:
        # Tiny C: skip the MXU (K=C would be >97% systolic-tile padding);
        # C unrolled VPU FMAs over the 128-wide lanes instead.
        w = w_ref[...].astype(jnp.float32)                # (out_c, C)
        acc = jnp.zeros(o_ref.shape, jnp.float32)
        for c in range(x.shape[0]):                       # static, tiny trip count
            acc = acc + w[:, c:c + 1] * xn[c:c + 1, :]
        out = acc + bias
    else:
        # Channel-mixing matmul on the MXU. Keep operands in the input dtype
        # (bf16 inputs stay bf16 -> full MXU rate on v5e/v6e/v7x); f32 accumulator.
        mm_dtype = x_ref.dtype
        out = jnp.dot(w_ref[...].astype(mm_dtype), xn.astype(mm_dtype),
                      preferred_element_type=jnp.float32)
        out = out + bias

    o_ref[...] = jnp.maximum(out, 0.0).astype(o_ref.dtype)


def _round_up(a, b):
    return (a + b - 1) // b * b


def identity_unet_block(x_nchw, gamma, beta, conv_w, conv_b):
    """Forward pass of IdentityUnetBlock.

    Args:
      x_nchw: (N, C, H, W) input.
      gamma, beta: (C, H, W) LayerNorm affine parameters.
      conv_w: (out_c, C, 1, 1) 1x1 conv weight.
      conv_b: (out_c,) conv bias.
    Returns:
      (N, out_c, H, W)
    """
    N, C, H, W = x_nchw.shape
    out_c = conv_w.shape[0]
    HW = H * W
    itemsize = jnp.dtype(x_nchw.dtype).itemsize

    # ---- LayerNorm statistics pre-pass (single mem-bound sweep, fused by XLA). ----
    xf = x_nchw.astype(jnp.float32).reshape(N, -1)
    m1 = jnp.mean(xf, axis=1)
    m2 = jnp.mean(xf * xf, axis=1)
    var = jnp.maximum(m2 - m1 * m1, 0.0)   # one-pass (biased) variance, f32 accum
    inv = jax.lax.rsqrt(var + EPS)
    stats = jnp.stack([m1, inv], axis=1).astype(jnp.float32)   # (N, 2) -> SMEM

    # ---- HW tile: lane-dense (multiple of 128), ~1 MiB of input per block. ----
    t_hw = (1 << 20) // max(1, C * itemsize)
    t_hw = max(128, min(t_hw, 4096))
    t_hw = (t_hw // 128) * 128
    t_hw = min(t_hw, _round_up(HW, 128))
    hw_pad = _round_up(HW, t_hw)
    n_hw = hw_pad // t_hw

    x_flat = x_nchw.reshape(N, C, HW)
    gamma_flat = gamma.reshape(C, HW)
    beta_flat = beta.reshape(C, HW)
    if hw_pad != HW:
        pad = hw_pad - HW
        x_flat = jnp.pad(x_flat, ((0, 0), (0, 0), (0, pad)))
        gamma_flat = jnp.pad(gamma_flat, ((0, 0), (0, pad)))
        beta_flat = jnp.pad(beta_flat, ((0, 0), (0, pad)))

    w2d = conv_w.reshape(out_c, C)
    b2d = conv_b.reshape(out_c, 1)

    # Below ~16 input channels, the MXU contraction is almost entirely padding.
    vpu_conv = C <= 16

    # Double-buffered x/gamma/beta/out blocks + f32 temporaries, with margin; cap at
    # 48 MiB to leave headroom under v7x's 64 MiB physical VMEM.
    vmem_need = 2 * (3 * C + out_c) * t_hw * itemsize + (C + out_c) * t_hw * 4
    vmem_bytes = int(min(max(2 * vmem_need, 16 << 20), 48 << 20))

    kernel = functools.partial(_identity_unet_block_kernel, vpu_conv=vpu_conv)

    out_flat = pl.pallas_call(
        kernel,
        out_shape=jax.ShapeDtypeStruct((N, out_c, hw_pad), x_nchw.dtype),
        grid_spec=pltpu.PrefetchScalarGridSpec(
            num_scalar_prefetch=1,
            grid=(N, n_hw),
            in_specs=[
                pl.BlockSpec((pl.Squeezed(), C, t_hw),
                             lambda n, t, stats: (n, 0, t)),
                pl.BlockSpec((C, t_hw), lambda n, t, stats: (0, t)),
                pl.BlockSpec((C, t_hw), lambda n, t, stats: (0, t)),
                pl.BlockSpec((out_c, C), lambda n, t, stats: (0, 0)),
                pl.BlockSpec((out_c, 1), lambda n, t, stats: (0, 0)),
            ],
            out_specs=pl.BlockSpec((pl.Squeezed(), out_c, t_hw),
                                   lambda n, t, stats: (n, 0, t)),
        ),
        compiler_params=pltpu.CompilerParams(
            dimension_semantics=("parallel", "parallel"),
            vmem_limit_bytes=vmem_bytes),
    )(stats, x_flat, gamma_flat, beta_flat, w2d, b2d)

    if hw_pad != HW:
        out_flat = out_flat[:, :, :HW]
    return out_flat.reshape(N, out_c, H, W)


def _reference(x, gamma, beta, conv_w, conv_b):
    # Pure-JAX reference mirroring the PyTorch module.
    N, C, H, W = x.shape
    xf = x.astype(jnp.float32)
    mean = jnp.mean(xf, axis=(1, 2, 3), keepdims=True)
    var = jnp.mean((xf - mean) ** 2, axis=(1, 2, 3), keepdims=True)
    xn = (xf - mean) / jnp.sqrt(var + EPS)
    xn = xn * gamma[None] + beta[None]
    w2d = conv_w.reshape(conv_w.shape[0], C)
    out = jnp.einsum("oc,nchw->nohw", w2d, xn) + conv_b[None, :, None, None]
    return jnp.maximum(out, 0.0)


if __name__ == "__main__":
    key = jax.random.PRNGKey(0)
    k_x, k_w, k_b = jax.random.split(key, 3)

    N, in_c, out_c, H, W = 2, 4, 8, 16, 16

    x = jax.random.normal(k_x, (N, in_c, H, W), dtype=jnp.float32)

    # LayerNorm params (PyTorch default init: ones / zeros).
    gamma = jnp.ones((in_c, H, W), dtype=jnp.float32)
    beta = jnp.zeros((in_c, H, W), dtype=jnp.float32)

    # Conv2d(in_c, out_c, kernel_size=1) params, deterministic init.
    bound = 1.0 / (in_c ** 0.5)
    conv_w = jax.random.uniform(k_w, (out_c, in_c, 1, 1), jnp.float32, -bound, bound)
    conv_b = jax.random.uniform(k_b, (out_c,), jnp.float32, -bound, bound)

    out = identity_unet_block(x, gamma, beta, conv_w, conv_b)
    out = jax.block_until_ready(out)

    ref = _reference(x, gamma, beta, conv_w, conv_b)
    assert out.shape == (N, out_c, H, W)
    assert jnp.allclose(out, ref, atol=1e-4, rtol=1e-4), "mismatch vs reference"

    print("KERNEL_OK")
</pallas_src>

<mosaic_0001>
module attributes {stable_mosaic.version = 11 : i64} {
  func.func @_identity_unet_block_kernel(%arg0: i32, %arg1: i32, %arg2: memref<2x2xf32, #tpu.memory_space<smem>>, %arg3: memref<1x4x256xf32, #tpu.memory_space<vmem>>, %arg4: memref<4x256xf32, #tpu.memory_space<vmem>>, %arg5: memref<4x256xf32, #tpu.memory_space<vmem>>, %arg6: memref<8x4xf32, #tpu.memory_space<vmem>>, %arg7: memref<8x1xf32, #tpu.memory_space<vmem>>, %arg8: memref<1x8x256xf32, #tpu.memory_space<vmem>>) attributes {dimension_semantics = [#tpu.dimension_semantics<parallel>, #tpu.dimension_semantics<parallel>], iteration_bounds = array<i64: 2, 1>, scalar_prefetch = 1 : i64, scratch_operands = 0 : i64, tpu.core_type = #tpu.core_type<tc>, window_params = [{transform_indices = @transform_0, window_bounds = array<i64: 1, 4, 256>}, {transform_indices = @transform_1, window_bounds = array<i64: 4, 256>}, {transform_indices = @transform_2, window_bounds = array<i64: 4, 256>}, {pipeline_mode = #tpu.pipeline_mode<synchronous>, transform_indices = @transform_3, window_bounds = array<i64: 8, 4>}, {pipeline_mode = #tpu.pipeline_mode<synchronous>, transform_indices = @transform_4, window_bounds = array<i64: 8, 1>}, {transform_indices = @transform_5, window_bounds = array<i64: 1, 8, 256>}]} {
    %0 = arith.index_cast %arg0 : i32 to index
    %c0 = arith.constant 0 : index
    %1 = memref.load %arg2[%0, %c0] : memref<2x2xf32, #tpu.memory_space<smem>>
    %2 = arith.index_cast %arg0 : i32 to index
    %c1 = arith.constant 1 : index
    %3 = memref.load %arg2[%2, %c1] : memref<2x2xf32, #tpu.memory_space<smem>>
    %c0_0 = arith.constant 0 : index
    %c0_1 = arith.constant 0 : index
    %c0_2 = arith.constant 0 : index
    %4 = vector.load %arg3[%c0_0, %c0_1, %c0_2] : memref<1x4x256xf32, #tpu.memory_space<vmem>>, vector<1x4x256xf32>
    %5 = vector.shape_cast %4 : vector<1x4x256xf32> to vector<4x256xf32>
    %6 = vector.broadcast %1 : f32 to vector<4x256xf32>
    %7 = arith.subf %5, %6 : vector<4x256xf32>
    %8 = vector.broadcast %3 : f32 to vector<4x256xf32>
    %9 = arith.mulf %7, %8 : vector<4x256xf32>
    %c0_3 = arith.constant 0 : index
    %c0_4 = arith.constant 0 : index
    %10 = vector.load %arg4[%c0_3, %c0_4] : memref<4x256xf32, #tpu.memory_space<vmem>>, vector<4x256xf32>
    %11 = arith.mulf %9, %10 : vector<4x256xf32>
    %c0_5 = arith.constant 0 : index
    %c0_6 = arith.constant 0 : index
    %12 = vector.load %arg5[%c0_5, %c0_6] : memref<4x256xf32, #tpu.memory_space<vmem>>, vector<4x256xf32>
    %13 = arith.addf %11, %12 : vector<4x256xf32>
    %c0_7 = arith.constant 0 : index
    %c0_8 = arith.constant 0 : index
    %14 = vector.load %arg7[%c0_7, %c0_8] : memref<8x1xf32, #tpu.memory_space<vmem>>, vector<8x1xf32>
    %c0_9 = arith.constant 0 : index
    %c0_10 = arith.constant 0 : index
    %15 = vector.load %arg6[%c0_9, %c0_10] : memref<8x4xf32, #tpu.memory_space<vmem>>, vector<8x4xf32>
    %cst = arith.constant 0.000000e+00 : f32
    %16 = vector.broadcast %cst : f32 to vector<8x256xf32>
    %17 = vector.extract_strided_slice %15 {offsets = [0, 0], sizes = [8, 1], strides = [1, 1]} : vector<8x4xf32> to vector<8x1xf32>
    %18 = vector.extract_strided_slice %13 {offsets = [0, 0], sizes = [1, 256], strides = [1, 1]} : vector<4x256xf32> to vector<1x256xf32>
    %19 = vector.broadcast %17 : vector<8x1xf32> to vector<8x256xf32>
    %20 = vector.broadcast %18 : vector<1x256xf32> to vector<8x256xf32>
    %21 = arith.mulf %19, %20 : vector<8x256xf32>
    %22 = arith.addf %16, %21 : vector<8x256xf32>
    %23 = vector.extract_strided_slice %15 {offsets = [0, 1], sizes = [8, 1], strides = [1, 1]} : vector<8x4xf32> to vector<8x1xf32>
    %24 = vector.extract_strided_slice %13 {offsets = [1, 0], sizes = [1, 256], strides = [1, 1]} : vector<4x256xf32> to vector<1x256xf32>
    %25 = vector.broadcast %23 : vector<8x1xf32> to vector<8x256xf32>
    %26 = vector.broadcast %24 : vector<1x256xf32> to vector<8x256xf32>
    %27 = arith.mulf %25, %26 : vector<8x256xf32>
    %28 = arith.addf %22, %27 : vector<8x256xf32>
    %29 = vector.extract_strided_slice %15 {offsets = [0, 2], sizes = [8, 1], strides = [1, 1]} : vector<8x4xf32> to vector<8x1xf32>
    %30 = vector.extract_strided_slice %13 {offsets = [2, 0], sizes = [1, 256], strides = [1, 1]} : vector<4x256xf32> to vector<1x256xf32>
    %31 = vector.broadcast %29 : vector<8x1xf32> to vector<8x256xf32>
    %32 = vector.broadcast %30 : vector<1x256xf32> to vector<8x256xf32>
    %33 = arith.mulf %31, %32 : vector<8x256xf32>
    %34 = arith.addf %28, %33 : vector<8x256xf32>
    %35 = vector.extract_strided_slice %15 {offsets = [0, 3], sizes = [8, 1], strides = [1, 1]} : vector<8x4xf32> to vector<8x1xf32>
    %36 = vector.extract_strided_slice %13 {offsets = [3, 0], sizes = [1, 256], strides = [1, 1]} : vector<4x256xf32> to vector<1x256xf32>
    %37 = vector.broadcast %35 : vector<8x1xf32> to vector<8x256xf32>
    %38 = vector.broadcast %36 : vector<1x256xf32> to vector<8x256xf32>
    %39 = arith.mulf %37, %38 : vector<8x256xf32>
    %40 = arith.addf %34, %39 : vector<8x256xf32>
    %41 = vector.broadcast %14 : vector<8x1xf32> to vector<8x256xf32>
    %42 = arith.addf %40, %41 : vector<8x256xf32>
    %cst_11 = arith.constant 0.000000e+00 : f32
    %43 = vector.broadcast %cst_11 : f32 to vector<8x256xf32>
    %44 = arith.maximumf %42, %43 : vector<8x256xf32>
    %c0_12 = arith.constant 0 : index
    %c0_13 = arith.constant 0 : index
    %c0_14 = arith.constant 0 : index
    %45 = vector.load %arg8[%c0_12, %c0_13, %c0_14] : memref<1x8x256xf32, #tpu.memory_space<vmem>>, vector<1x8x256xf32>
    %46 = vector.shape_cast %45 : vector<1x8x256xf32> to vector<8x256xf32>
    %47 = vector.shape_cast %44 : vector<8x256xf32> to vector<1x8x256xf32>
    tpu.vector_store %arg8[%c0_12, %c0_13, %c0_14], %47 {strides = array<i32>} : memref<1x8x256xf32, #tpu.memory_space<vmem>>, vector<1x8x256xf32>,
    return
  }
  func.func @transform_0(%arg0: i32, %arg1: i32, %arg2: memref<2x2xf32, #tpu.memory_space<smem>>) -> (i32, i32, i32) {
    %c0_i32 = arith.constant 0 : i32
    %c0_i32_0 = arith.constant 0 : i32
    return %arg0, %c0_i32, %arg1 : i32, i32, i32
  }
  func.func @transform_1(%arg0: i32, %arg1: i32, %arg2: memref<2x2xf32, #tpu.memory_space<smem>>) -> (i32, i32) {
    %c0_i32 = arith.constant 0 : i32
    %c0_i32_0 = arith.constant 0 : i32
    return %c0_i32, %arg1 : i32, i32
  }
  func.func @transform_2(%arg0: i32, %arg1: i32, %arg2: memref<2x2xf32, #tpu.memory_space<smem>>) -> (i32, i32) {
    %c0_i32 = arith.constant 0 : i32
    %c0_i32_0 = arith.constant 0 : i32
    return %c0_i32, %arg1 : i32, i32
  }
  func.func @transform_3(%arg0: i32, %arg1: i32, %arg2: memref<2x2xf32, #tpu.memory_space<smem>>) -> (i32, i32) {
    %c0_i32 = arith.constant 0 : i32
    %c0_i32_0 = arith.constant 0 : i32
    %c0_i32_1 = arith.constant 0 : i32
    return %c0_i32, %c0_i32_0 : i32, i32
  }
  func.func @transform_4(%arg0: i32, %arg1: i32, %arg2: memref<2x2xf32, #tpu.memory_space<smem>>) -> (i32, i32) {
    %c0_i32 = arith.constant 0 : i32
    %c0_i32_0 = arith.constant 0 : i32
    %c0_i32_1 = arith.constant 0 : i32
    return %c0_i32, %c0_i32_0 : i32, i32
  }
  func.func @transform_5(%arg0: i32, %arg1: i32, %arg2: memref<2x2xf32, #tpu.memory_space<smem>>) -> (i32, i32, i32) {
    %c0_i32 = arith.constant 0 : i32
    %c0_i32_0 = arith.constant 0 : i32
    return %arg0, %c0_i32, %arg1 : i32, i32, i32
  }
}

</mosaic_0001>

<llo_original>
// kernel: tpu_custom_call.1
$region0: #{tpu_custom_call.1}
  #allocation0 [shape = 'u32[]', space=smem, size = 0x4, offset = 0x4, fixed_abs, tag = 'smem constant byte address 0x4 - core index']
  #allocation1 [shape = 'u32[144,128]{1,0:T(1,128)}', space=vmem, size = 0x12000, scoped, tag = 'internal scratch']
  #allocation2 [shape = 's32[1]{0}', space=sflag, size = 0x4, scoped, tag = 'scoped memory for tpu_custom_call.1']
  #allocation3 [shape = 'u8[1024]{0}', space=smem, size = 0x400, scoped, tag = 'prefetched SMEM operand 0']
  %s0 = inlined_call_operand.hbm [shape: f32[2,2], index: 0, kind: input, shape index: {}]
  %s1 = inlined_call_operand.vmem [shape: f32[2,4,256], index: 1, kind: input, shape index: {}]
  %s2 = inlined_call_operand.vmem [shape: f32[4,256], index: 2, kind: input, shape index: {}]
  %s3 = inlined_call_operand.hbm [shape: f32[4,256], index: 3, kind: input, shape index: {}]
  %s4 = inlined_call_operand.vmem [shape: f32[8,4], index: 4, kind: input, shape index: {}]
  %s5 = inlined_call_operand.vmem [shape: f32[8,1], index: 5, kind: input, shape index: {}]
  %s6 = inlined_call_operand.hbm [shape: f32[2,8,256], index: 6, kind: output, shape index: {}]
  %s7 = sld [smem:[#allocation0]]
  $region57: #{tpu_custom_call.1} parent=0
    _
  %s9 = ssub.s32 1, %s7
  %s10 = scalar_select 0, %s9, %s7
  %12 = dma.hbm_to_smem %s0, 32, [#allocation3], [#allocation2]
  %13 = dma.done [#allocation2], 32
  %14 = sfence
  $region1: #{tpu_custom_call.1} parent=0
    #allocation4 [shape = 'u8[4096]{0}', space=vmem, size = 0x1000, scoped, tag = 'input window, operand 3, single buffered']
    #allocation5 [shape = 's32[2]{0}', space=sflag, size = 0x8, scoped, tag = 'scoped memory for tpu_custom_call.1']
    #allocation6 [shape = 's32[2]{0}', space=sflag, size = 0x8, scoped, tag = 'scoped memory for tpu_custom_call.1']
    #allocation7 [shape = 'u8[16384]{0}', space=vmem, size = 0x4000, scoped, tag = 'output window, operand 0']
    %15 = vsyncpa [#allocation5], 0
    %16 = vsyncpa [#allocation6], 0
    %s17 = scalar_lea.sflag [#allocation6], 1
    %18 = vsyncpa %s17, 0
    loop: start=0, step=1, limit=4
    $region2: #{tpu_custom_call.1} parent=1 // loop_pre_header
      _
    $region3: #{tpu_custom_call.1} parent=1 // loop_header
      %s20 = sphi 0, %s24
      %p21 = scmp.ge.s32.totalorder %s20, 4
      %s27 = sphi 0, %s39
      %s28 = sphi 0, %s35
      %s29 = sphi 0, %s27
      %s30 = sphi 0, %s28
      %s31 = sphi 0, %s29
      %s32 = sphi 0, %s30
      %s44 = sphi 0, %s46
      %s47 = sphi 0, %s44
      %s48 = sphi 0, %s47
      %s64 = sphi 0, %s48
      %s70 = sphi 0, %s72
      %s73 = sphi 0, %s70
      %s74 = sphi 0, %s73
      %s90 = sphi 0, %s74
      %s96 = sphi 0, %s98
      %s99 = sphi 0, %s96
      %s100 = sphi 0, %s99
      %s116 = sphi 0, %s100
      %s120 = sphi 0, %s120
      %s122 = sphi 0, %s120
      %s123 = sphi 0, %s122
      %s137 = sphi 0, %s123
      %s141 = sphi 0, %s141
      %s143 = sphi 0, %s141
      %s144 = sphi 0, %s143
      %s158 = sphi 0, %s144
      %s166 = sphi 0, %s168
      %s169 = sphi 0, %s166
      %s170 = sphi 0, %s169
      %s186 = sphi 0, %s170
    $region4: #{tpu_custom_call.1} parent=1 // loop_header_branch
      %23 = sbr.rel (%p21) target = $region8
    $region5: #{tpu_custom_call.1} parent=1 // loop_body
      %s25 = ssub.s32 %s20, 1
      %s26 = ssub.s32 %s20, 2
      %s33 = sadd.s32 1, %s28
      %p34 = scmp.ge.s32.totalorder %s33, 1
      %s35 = scalar_select %p34, 0, %s33
      %s36 = sadd.s32 1, %s27
      %s37 = scalar_select %p34, %s36, %s27
      %p38 = scmp.ge.s32.totalorder %s37, 2
      %s39 = scalar_select %p38, 0, %s37
      %s40 = ssub.s32 %s27, %s39
      %s41 = ssub.s32 %s28, %s35
      %s42 = sor.u32 %s40, %s41
      %p43 = scmp.eq.s32.totalorder %s42, 0
      %s45 = sadd.s32 %s44, 1
      %s46 = scalar_select %p43, %s44, %s45
      %p49 = pneg %p43
      %p50 = scmp.eq.s32.totalorder %s20, 1
      %p51 = por %p49, %p50
      %p52 = scmp.ne.s32.totalorder %s44, %s47
      %p53 = scmp.eq.s32.totalorder %s20, 0
      %p54 = por %p52, %p53
      %p55 = scmp.ne.s32.totalorder %s44, %s47
      %p56 = scmp.eq.s32.totalorder %s25, 1
      %p57 = por %p55, %p56
      %p58 = scmp.ne.s32.totalorder %s47, %s48
      %p59 = scmp.eq.s32.totalorder %s25, 0
      %p60 = por %p58, %p59
      %p61 = scmp.ne.s32.totalorder %s47, %s48
      %p62 = scmp.eq.s32.totalorder %s26, 1
      %p63 = por %p61, %p62
      %p65 = scmp.ne.s32.totalorder %s48, %s64
      %p66 = scmp.eq.s32.totalorder %s26, 0
      %p67 = por %p65, %p66
      %s68 = ssub.s32 %s28, %s35
      %p69 = scmp.eq.s32.totalorder %s68, 0
      %s71 = sadd.s32 %s70, 1
      %s72 = scalar_select %p69, %s70, %s71
      %p75 = pneg %p69
      %p76 = scmp.eq.s32.totalorder %s20, 1
      %p77 = por %p75, %p76
      %p78 = scmp.ne.s32.totalorder %s70, %s73
      %p79 = scmp.eq.s32.totalorder %s20, 0
      %p80 = por %p78, %p79
      %p81 = scmp.ne.s32.totalorder %s70, %s73
      %p82 = scmp.eq.s32.totalorder %s25, 1
      %p83 = por %p81, %p82
      %p84 = scmp.ne.s32.totalorder %s73, %s74
      %p85 = scmp.eq.s32.totalorder %s25, 0
      %p86 = por %p84, %p85
      %p87 = scmp.ne.s32.totalorder %s73, %s74
      %p88 = scmp.eq.s32.totalorder %s26, 1
      %p89 = por %p87, %p88
      %p91 = scmp.ne.s32.totalorder %s74, %s90
      %p92 = scmp.eq.s32.totalorder %s26, 0
      %p93 = por %p91, %p92
      %s94 = ssub.s32 %s28, %s35
      %p95 = scmp.eq.s32.totalorder %s94, 0
      %s97 = sadd.s32 %s96, 1
      %s98 = scalar_select %p95, %s96, %s97
      %p101 = pneg %p95
      %p102 = scmp.eq.s32.totalorder %s20, 1
      %p103 = por %p101, %p102
      %p104 = scmp.ne.s32.totalorder %s96, %s99
      %p105 = scmp.eq.s32.totalorder %s20, 0
      %p106 = por %p104, %p105
      %p107 = scmp.ne.s32.totalorder %s96, %s99
      %p108 = scmp.eq.s32.totalorder %s25, 1
      %p109 = por %p107, %p108
      %p110 = scmp.ne.s32.totalorder %s99, %s100
      %p111 = scmp.eq.s32.totalorder %s25, 0
      %p112 = por %p110, %p111
      %p113 = scmp.ne.s32.totalorder %s99, %s100
      %p114 = scmp.eq.s32.totalorder %s26, 1
      %p115 = por %p113, %p114
      %p117 = scmp.ne.s32.totalorder %s100, %s116
      %p118 = scmp.eq.s32.totalorder %s26, 0
      %p119 = por %p117, %p118
      %s121 = sadd.s32 %s120, 1
      %p124 = scmp.eq.s32.totalorder %s20, 1
      %p125 = scmp.ne.s32.totalorder %s120, %s122
      %p126 = scmp.eq.s32.totalorder %s20, 0
      %p127 = por %p125, %p126
      %p128 = scmp.ne.s32.totalorder %s120, %s122
      %p129 = scmp.eq.s32.totalorder %s25, 1
      %p130 = por %p128, %p129
      %p131 = scmp.ne.s32.totalorder %s122, %s123
      %p132 = scmp.eq.s32.totalorder %s25, 0
      %p133 = por %p131, %p132
      %p134 = scmp.ne.s32.totalorder %s122, %s123
      %p135 = scmp.eq.s32.totalorder %s26, 1
      %p136 = por %p134, %p135
      %p138 = scmp.ne.s32.totalorder %s123, %s137
      %p139 = scmp.eq.s32.totalorder %s26, 0
      %p140 = por %p138, %p139
      %s142 = sadd.s32 %s141, 1
      %p145 = scmp.eq.s32.totalorder %s20, 1
      %p146 = scmp.ne.s32.totalorder %s141, %s143
      %p147 = scmp.eq.s32.totalorder %s20, 0
      %p148 = por %p146, %p147
      %p149 = scmp.ne.s32.totalorder %s141, %s143
      %p150 = scmp.eq.s32.totalorder %s25, 1
      %p151 = por %p149, %p150
      %p152 = scmp.ne.s32.totalorder %s143, %s144
      %p153 = scmp.eq.s32.totalorder %s25, 0
      %p154 = por %p152, %p153
      %p155 = scmp.ne.s32.totalorder %s143, %s144
      %p156 = scmp.eq.s32.totalorder %s26, 1
      %p157 = por %p155, %p156
      %p159 = scmp.ne.s32.totalorder %s144, %s158
      %p160 = scmp.eq.s32.totalorder %s26, 0
      %p161 = por %p159, %p160
      %s162 = ssub.s32 %s27, %s39
      %s163 = ssub.s32 %s28, %s35
      %s164 = sor.u32 %s162, %s163
      %p165 = scmp.eq.s32.totalorder %s164, 0
      %s167 = sadd.s32 %s166, 1
      %s168 = scalar_select %p165, %s166, %s167
      %p171 = pneg %p165
      %p172 = scmp.eq.s32.totalorder %s20, 1
      %p173 = por %p171, %p172
      %p174 = scmp.ne.s32.totalorder %s166, %s169
      %p175 = scmp.eq.s32.totalorder %s20, 0
      %p176 = por %p174, %p175
      %p177 = scmp.ne.s32.totalorder %s166, %s169
      %p178 = scmp.eq.s32.totalorder %s25, 1
      %p179 = por %p177, %p178
      %p180 = scmp.ne.s32.totalorder %s169, %s170
      %p181 = scmp.eq.s32.totalorder %s25, 0
      %p182 = por %p180, %p181
      %p183 = scmp.ne.s32.totalorder %s169, %s170
      %p184 = scmp.eq.s32.totalorder %s26, 1
      %p185 = por %p183, %p184
      %p187 = scmp.ne.s32.totalorder %s170, %s186
      %p188 = scmp.eq.s32.totalorder %s26, 0
      %p189 = por %p187, %p188
      %p190 = scmp.le.s32.totalorder 1, %s20
      %p191 = scmp.lt.s32.totalorder %s20, 3
      %p192 = pnand %p190, %p191
      %p193 = pneg %p192
      // Predicated region
      $region9: #{tpu_custom_call.1} parent=5 // pred_check
        _
      $region10: #{tpu_custom_call.1} parent=5 // pred_check_branch
        %195 = sbr.rel (%p192) target = $region12
      $region11: #{tpu_custom_call.1} parent=5 // pred_region
        %s196 = ssub.s32 %s20, 1
        // Predicated region
        $region13: #{tpu_custom_call.1} parent=11 // pred_check
          %p197 = pneg %p86
        $region14: #{tpu_custom_call.1} parent=11 // pred_check_branch
          %199 = sbr.rel (%p197) target = $region16
        $region15: #{tpu_custom_call.1} parent=11 // pred_region
          %s200 = smul.u32 2, %s30
          %p201 = scmp.lt.s32.totalorder %s200, 1
          %s202 = scalar_select %p201, %s200, 1
          %s203 = smul.addr %s202, 4
          %s204 = scalar_lea.vmem %s2, %s203
          %s205 = smul.u32 2, %s30
        $region16: #{tpu_custom_call.1} parent=11 // pred_fallthru
          _
        // Predicated region
        $region17: #{tpu_custom_call.1} parent=11 // pred_check
          %p206 = pneg %p112
        $region18: #{tpu_custom_call.1} parent=11 // pred_check_branch
          %208 = sbr.rel (%p206) target = $region20
        $region19: #{tpu_custom_call.1} parent=11 // pred_region
          %s209 = smul.u32 2, %s30
          %s211 = ssub.s32 128, 128
          %212 = vsyncadd [#allocation5], %s211
          %s213 = smul.addr %s209, 64
          %s214 = scalar_lea.hbm %s3, %s213
          %s216 = sshll.u32 [#allocation4], 4
          %s217 = int_to_ptr.vmem [resolvable:$true] %s216
          %219 = dma.hbm_to_vmem [thread:$0]  %s214, 128, %s217, [#allocation5]
        $region20: #{tpu_custom_call.1} parent=11 // pred_fallthru
          _
        // Predicated region
        $region21: #{tpu_custom_call.1} parent=11 // pred_check
          %p220 = pneg %p133
        $region22: #{tpu_custom_call.1} parent=11 // pred_check_branch
          %222 = sbr.rel (%p220) target = $region24
        $region23: #{tpu_custom_call.1} parent=11 // pred_region
          _
        $region24: #{tpu_custom_call.1} parent=11 // pred_fallthru
          _
        // Predicated region
        $region25: #{tpu_custom_call.1} parent=11 // pred_check
          %p223 = pneg %p154
        $region26: #{tpu_custom_call.1} parent=11 // pred_check_branch
          %225 = sbr.rel (%p223) target = $region28
        $region27: #{tpu_custom_call.1} parent=11 // pred_region
          _
        $region28: #{tpu_custom_call.1} parent=11 // pred_fallthru
          _
      $region12: #{tpu_custom_call.1} parent=5 // pred_fallthru
        _
      %p226 = scmp.lt.s32.totalorder %s20, 2
      // Predicated region
      $region29: #{tpu_custom_call.1} parent=5 // pred_check
        %p227 = pneg %p226
      $region30: #{tpu_custom_call.1} parent=5 // pred_check_branch
        %229 = sbr.rel (%p227) target = $region32
      $region31: #{tpu_custom_call.1} parent=5 // pred_region
        // Predicated region
        $region33: #{tpu_custom_call.1} parent=31 // pred_check
          %p230 = pneg %p54
        $region34: #{tpu_custom_call.1} parent=31 // pred_check_branch
          %232 = sbr.rel (%p230) target = $region36
        $region35: #{tpu_custom_call.1} parent=31 // pred_region
          %s233 = smul.u32 2, %s28
          %p234 = scmp.lt.s32.totalorder %s27, 1
          %s235 = scalar_select %p234, %s27, 1
          %p236 = scmp.lt.s32.totalorder %s233, 1
          %s237 = scalar_select %p236, %s233, 1
          %s238 = smul.addr %s235, 2
          %s239 = sadd.s32 %s237, %s238
          %s240 = smul.addr %s239, 4
          %s241 = scalar_lea.vmem %s1, %s240
          %s242 = smul.u32 2, %s28
        $region36: #{tpu_custom_call.1} parent=31 // pred_fallthru
          _
      $region32: #{tpu_custom_call.1} parent=5 // pred_fallthru
        _
      %p243 = scmp.le.s32.totalorder 1, %s20
      %p244 = scmp.lt.s32.totalorder %s20, 3
      %p245 = pnand %p243, %p244
      %p246 = pneg %p245
      // Predicated region
      $region37: #{tpu_custom_call.1} parent=5 // pred_check
        _
      $region38: #{tpu_custom_call.1} parent=5 // pred_check_branch
        %248 = sbr.rel (%p245) target = $region40
      $region39: #{tpu_custom_call.1} parent=5 // pred_region
        %s249 = ssub.s32 %s20, 1
        // Predicated region
        $region41: #{tpu_custom_call.1} parent=39 // pred_check
          %p250 = pneg %p112
        $region42: #{tpu_custom_call.1} parent=39 // pred_check_branch
          %252 = sbr.rel (%p250) target = $region44
        $region43: #{tpu_custom_call.1} parent=39 // pred_region
          %253 = dma.done [#allocation5], 128
        $region44: #{tpu_custom_call.1} parent=39 // pred_fallthru
          _
        %s254 = smul.u32 2, %s30
        %p255 = scmp.lt.s32.totalorder %s29, 1
        %s256 = scalar_select %p255, %s29, 1
        %p257 = scmp.lt.s32.totalorder %s254, 1
        %s258 = scalar_select %p257, %s254, 1
        %s259 = smul.addr %s256, 2
        %s260 = sadd.s32 %s258, %s259
        %s261 = smul.addr %s260, 4
        %s262 = scalar_lea.vmem %s1, %s261
        %p263 = pneg %p60
        %p264 = pneg %p57
        %s265 = smul.u32 2, %s30
        %p266 = scmp.lt.s32.totalorder %s265, 1
        %s267 = scalar_select %p266, %s265, 1
        %s268 = smul.addr %s267, 4
        %s269 = scalar_lea.vmem %s2, %s268
        %p270 = pneg %p86
        %p271 = pneg %p83
        %p272 = pneg %p112
        %p273 = pneg %p109
        %p274 = pneg %p133
        %p275 = pneg %p130
        %p276 = pneg %p154
        %p277 = pneg %p151
        %p278 = pneg %p182
        %p279 = pneg %p179
        %s280 = sand.u32 %s169, 1
        %s281 = scalar_lea.sflag [#allocation6], %s280
        %s282 = sand.u32 %s169, 1
        %s283 = smul.addr %s282, 16
        %s284 = scalar_lea.vmem [#allocation7], %s283
        %s285 = smul.u32 2, %s30
        %p286 = scmp.lt.s32.totalorder %s29, 1
        %s287 = scalar_select %p286, %s29, 1
        %p288 = scmp.lt.s32.totalorder %s285, 1
        %s289 = scalar_select %p288, %s285, 1
        %s290 = smul.addr %s287, 2
        %s291 = sadd.s32 %s289, %s290
        %s292 = smul.addr %s291, 4
        %s293 = scalar_lea.vmem %s1, %s292
        %s294 = smul.u32 2, %s30
        %s295 = smul.u32 2, %s30
        %p296 = scmp.lt.s32.totalorder %s295, 1
        %s297 = scalar_select %p296, %s295, 1
        %s298 = smul.addr %s297, 4
        %s299 = scalar_lea.vmem %s2, %s298
        %s300 = smul.u32 2, %s30
        %s301 = smul.u32 2, %s30
        %s302 = smul.u32 2, %s30
        %s303 = smul.u32 %s29, 128
        %s304 = sld [smem:[#allocation3 + %s303]]
        %s305 = sadd.s32 %s303, 1
        %s306 = sld [smem:[#allocation3 + %s305]]
        %v307 = vld [vmem:[%s293] sm:$0xff]
        %v308 = vstv %s304
        %v309 = vsub.f32 %v307, %v308
        %v310 = vstv %s306
        %v311 = vmul.f32 %v309, %v310
        %v312 = vld [vmem:[%s299] sm:$0xff]
        %v313 = vmul.f32 %v311, %v312
        %v314 = vld [vmem:[#allocation4] sm:$0xff]
        %v315 = vadd.f32 %v313, %v314
        %v316 = vld [vmem:[%s5] sm:$0xff]
        %v317 = vld [vmem:[%s4] sm:$0xff]
        %319 = vset.pattern.permute.xlu0 0
        %320 = vperm.xlu0 %319, %v317
        %v321 = vpop.permute.xlu0 %320
        %v324 = vlaneseq
        %v325 = vshrl.u32 %v324, 7
        %v326 = vsub.s32 0, %v325
        %v327 = vrot.slane %v315, %v326
        %v328 = vlaneseq
        %v329 = vshrl.u32 %v328, 7
        %v330 = vsub.s32 4, %v329
        %v331 = vrot.slane %v315, %v330
        %v334 = vlaneseq
        %v335 = vshrl.u32 %v334, 7
        %v336 = vsub.s32 0, %v335
        %v337 = vrot.slane %v327, %v336
        %v338 = vlaneseq
        %v339 = vshrl.u32 %v338, 7
        %v340 = vsub.s32 0, %v339
        %v341 = vrot.slane %v331, %v340
        %v342 = vmul.f32 %v321, %v337
        %v343 = vmul.f32 %v321, %v341
        %v344 = vadd.f32 %v342, 0.0
        %v345 = vadd.f32 %v343, 0.0
        %346 = vset.pattern.permute.xlu0 1
        %347 = vperm.xlu0 %346, %v317
        %v348 = vpop.permute.xlu0 %347
        %v350 = vlaneseq
        %v351 = vshrl.u32 %v350, 7
        %v352 = vsub.s32 1, %v351
        %v353 = vrot.slane %v315, %v352
        %v354 = vlaneseq
        %v355 = vshrl.u32 %v354, 7
        %v356 = vsub.s32 5, %v355
        %v357 = vrot.slane %v315, %v356
        %v360 = vlaneseq
        %v361 = vshrl.u32 %v360, 7
        %v362 = vsub.s32 1, %v361
        %v363 = vrot.slane %v353, %v362
        %v364 = vlaneseq
        %v365 = vshrl.u32 %v364, 7
        %v366 = vsub.s32 1, %v365
        %v367 = vrot.slane %v357, %v366
        %v368 = vmul.f32 %v348, %v363
        %v369 = vmul.f32 %v348, %v367
        %v370 = vadd.f32 %v344, %v368
        %v371 = vadd.f32 %v345, %v369
        %372 = vset.pattern.permute.xlu0 2
        %373 = vperm.xlu0 %372, %v317
        %v374 = vpop.permute.xlu0 %373
        %v376 = vlaneseq
        %v377 = vshrl.u32 %v376, 7
        %v378 = vsub.s32 2, %v377
        %v379 = vrot.slane %v315, %v378
        %v380 = vlaneseq
        %v381 = vshrl.u32 %v380, 7
        %v382 = vsub.s32 6, %v381
        %v383 = vrot.slane %v315, %v382
        %v386 = vlaneseq
        %v387 = vshrl.u32 %v386, 7
        %v388 = vsub.s32 2, %v387
        %v389 = vrot.slane %v379, %v388
        %v390 = vlaneseq
        %v391 = vshrl.u32 %v390, 7
        %v392 = vsub.s32 2, %v391
        %v393 = vrot.slane %v383, %v392
        %v394 = vmul.f32 %v374, %v389
        %v395 = vmul.f32 %v374, %v393
        %v396 = vadd.f32 %v370, %v394
        %v397 = vadd.f32 %v371, %v395
        %398 = vset.pattern.permute.xlu0 3
        %399 = vperm.xlu0 %398, %v317
        %v400 = vpop.permute.xlu0 %399
        %v402 = vlaneseq
        %v403 = vshrl.u32 %v402, 7
        %v404 = vsub.s32 3, %v403
        %v405 = vrot.slane %v315, %v404
        %v406 = vlaneseq
        %v407 = vshrl.u32 %v406, 7
        %v408 = vsub.s32 7, %v407
        %v409 = vrot.slane %v315, %v408
        %v412 = vlaneseq
        %v413 = vshrl.u32 %v412, 7
        %v414 = vsub.s32 3, %v413
        %v415 = vrot.slane %v405, %v414
        %v416 = vlaneseq
        %v417 = vshrl.u32 %v416, 7
        %v418 = vsub.s32 3, %v417
        %v419 = vrot.slane %v409, %v418
        %v420 = vmul.f32 %v400, %v415
        %v421 = vmul.f32 %v400, %v419
        %v422 = vadd.f32 %v396, %v420
        %v423 = vadd.f32 %v397, %v421
        %425 = vset.pattern.permute.xlu0 0
        %426 = vperm.xlu0 %425, %v316
        %v427 = vpop.permute.xlu0 %426
        %v429 = vadd.f32 %v422, %v427
        %v430 = vadd.f32 %v423, %v427
        %v431 = vmax.f32 %v429, 0.0
        %v432 = vmax.f32 %v430, 0.0
        %433 = vst [vmem:[%s284] sm:$0xff] %v431
        %434 = vst [vmem:[%s284 + $0x8] sm:$0xff] %v432
        %s435 = sand.u32 %s169, 1
        %s436 = scalar_lea.sflag [#allocation6], %s435
        %s437 = sand.u32 %s169, 1
        %s438 = smul.addr %s437, 16
        %s439 = scalar_lea.vmem [#allocation7], %s438
        // Predicated region
        $region45: #{tpu_custom_call.1} parent=39 // pred_check
          %p440 = pneg %p179
        $region46: #{tpu_custom_call.1} parent=39 // pred_check_branch
          %442 = sbr.rel (%p440) target = $region48
        $region47: #{tpu_custom_call.1} parent=39 // pred_region
          %s443 = smul.u32 2, %s30
          %s445 = ssub.s32 256, 256
          %446 = vsyncadd %s436, %s445
          %s447 = smul.addr %s29, 2
          %s448 = sadd.s32 %s443, %s447
          %s449 = smul.addr %s448, 128
          %s450 = scalar_lea.hbm %s6, %s449
          %s452 = sshll.u32 %s439, 4
          %s453 = int_to_ptr.vmem [resolvable:$true] %s452
          %455 = dma.vmem_to_hbm [thread:$0]  %s453, 256, %s450, %s436
        $region48: #{tpu_custom_call.1} parent=39 // pred_fallthru
          _
      $region40: #{tpu_custom_call.1} parent=5 // pred_fallthru
        _
      %p456 = scmp.le.s32.totalorder 2, %s20
      // Predicated region
      $region49: #{tpu_custom_call.1} parent=5 // pred_check
        %p457 = pneg %p456
      $region50: #{tpu_custom_call.1} parent=5 // pred_check_branch
        %459 = sbr.rel (%p457) target = $region52
      $region51: #{tpu_custom_call.1} parent=5 // pred_region
        %s460 = ssub.s32 %s20, 2
        // Predicated region
        $region53: #{tpu_custom_call.1} parent=51 // pred_check
          %p461 = pneg %p185
        $region54: #{tpu_custom_call.1} parent=51 // pred_check_branch
          %463 = sbr.rel (%p461) target = $region56
        $region55: #{tpu_custom_call.1} parent=51 // pred_region
          %s464 = sand.u32 %s170, 1
          %s465 = scalar_lea.sflag [#allocation6], %s464
          %s466 = sand.u32 %s170, 1
          %s467 = smul.addr %s466, 16
          %s468 = scalar_lea.vmem [#allocation7], %s467
          %469 = dma.done %s465, 256
        $region56: #{tpu_custom_call.1} parent=51 // pred_fallthru
          _
      $region52: #{tpu_custom_call.1} parent=5 // pred_fallthru
        _
    $region6: #{tpu_custom_call.1} parent=1 // loop_footer
      %s24 = sadd.s32 1, %s20
    $region7: #{tpu_custom_call.1} parent=1 // loop_footer_branch
      %19 = sbr.rel target = $region3
    $region8: #{tpu_custom_call.1} parent=1 // loop_exit
      _
    %470 = vsyncpa [#allocation5], 1
    %s471 = scalar_lea.sflag [#allocation5], 1
    %472 = vsyncpa %s471, 1
    %473 = vsyncpa [#allocation6], 1
    %s474 = scalar_lea.sflag [#allocation6], 1
    %475 = vsyncpa %s474, 1

</llo_original>
